<compile_context>
chip_gen: v6e
topology: v6e:2x2x1
jax: 0.10.0
libtpu: 0.0.40
codegen_flags: <defaults>
</compile_context>

<pallas_src>
import numpy as np

import jax
import jax.numpy as jnp
from jax.experimental import pallas as pl
from jax.experimental.pallas import tpu as pltpu


# ----------------------------------------------------------------------------
# Deterministic parameter construction (mirrors the PyTorch __init__)
# ----------------------------------------------------------------------------
def build_params():
    # Synthetic but physically-plausible config values (deterministic).
    m = 1000.0
    g = 9.81
    rho_water = 1025.0
    disp = 1.0
    gm = 0.5
    ixx = 100.0
    izz = 200.0
    xg = 0.1
    zg = -0.05
    xud = -50.0
    yvd = -80.0
    ypd = -5.0
    yrd = -10.0
    kvd = -5.0
    kpd = -20.0
    krd = -2.0
    nvd = -10.0
    npd = -2.0
    nrd = -40.0

    m_rb = np.array(
        [
            [m, 0.0, 0.0, 0.0],
            [0.0, m, -m * zg, m * xg],
            [0.0, -m * zg, ixx, 0.0],
            [0.0, m * xg, 0.0, izz],
        ],
        dtype=np.float32,
    )
    m_a = np.array(
        [
            [xud, 0.0, 0.0, 0.0],
            [0.0, yvd, ypd, yrd],
            [0.0, kvd, kpd, krd],
            [0.0, nvd, npd, nrd],
        ],
        dtype=np.float32,
    )
    # Parameters as stored by the PyTorch module:
    inv_mass = np.linalg.inv(m_rb + m_a).T.astype(np.float32)  # inv(M)^T
    crb = np.array(
        [
            [0.0, -m, m * zg, -m * xg],
            [m, 0.0, 0.0, 0.0],
            [-m * zg, 0.0, 0.0, 0.0],
            [m * xg, 0.0, 0.0, 0.0],
        ],
        dtype=np.float32,
    ).T  # C_RB^T
    buoyancy = np.zeros((4, 4), dtype=np.float32)
    buoyancy[2, 2] = rho_water * g * disp * gm

    return crb, buoyancy, inv_mass


# ----------------------------------------------------------------------------
# Kernel factory: bakes the 4x4 matrices as Python-scalar FMA coefficients.
# ----------------------------------------------------------------------------
def make_maneuvering_kernel(crb, buoyancy, inv_mass, time_delta):
    crb_c = [[float(crb[i, j]) for j in range(4)] for i in range(4)]
    invm_c = [[float(inv_mass[i, j]) for j in range(4)] for i in range(4)]
    k_buoy = float(buoyancy[2, 2])
    dt = float(time_delta)

    def kernel(control_ref, state_ref, out_ref):
        # control_ref: (4, s, L), state_ref: (5, s, L), out_ref: (5, s, L)
        # State features: u, v, p, r, phi -- each a dense (s, L) slab.
        vel = tuple(state_ref[i] for i in range(4))
        phi = state_ref[4]
        r = vel[3]
        rv = tuple(r * vel[i] for i in range(4))

        # tau[j] = control[j] - sum_i crb[i, j] * (r * vel[i])
        #                     - phi * buoyancy[2, j]
        tau = []
        for j in range(4):
            t = control_ref[j]
            for i in range(4):
                cij = crb_c[i][j]
                if cij != 0.0:  # trace-time skip of zero coefficients
                    t = t - cij * rv[i]
            if j == 2 and k_buoy != 0.0:
                t = t - k_buoy * phi
            tau.append(t)

        # acceleration[j] = sum_i inv_mass[i, j] * tau[i]; integrate + store.
        for j in range(4):
            acc = None
            for i in range(4):
                mij = invm_c[i][j]
                if mij != 0.0:
                    term = mij * tau[i]
                    acc = term if acc is None else acc + term
            vj_new = vel[j] if acc is None else vel[j] + dt * acc
            out_ref[j] = vj_new.astype(out_ref.dtype)

        # roll_new = phi + dt * p
        out_ref[4] = (phi + dt * vel[2]).astype(out_ref.dtype)

    return kernel


# ----------------------------------------------------------------------------
# Wrapper: (B, T, F) -> dense SoA (F, S, L) slabs, cdiv grid over S.
# ----------------------------------------------------------------------------
def maneuvering_forward(control, state, crb, buoyancy, inv_mass, time_delta,
                        lane_width=512, sub_tile=64):
    B, T, _ = state.shape
    N = B * T
    out_dtype = state.dtype

    # SoA transpose: feature axis leading, flattened batch*time axis folded
    # into a (sublane, lane) slab so every vreg is fully utilised in-kernel.
    control_t = control.reshape(N, 4).T   # (4, N)
    state_t = state.reshape(N, 5).T       # (5, N)

    L = lane_width
    n_pad = pl.cdiv(N, L) * L
    if n_pad != N:
        pad = ((0, 0), (0, n_pad - N))
        control_t = jnp.pad(control_t, pad)
        state_t = jnp.pad(state_t, pad)
    S = n_pad // L
    control_3d = control_t.reshape(4, S, L)
    state_3d = state_t.reshape(5, S, L)

    # Block over the S axis; full-extent block if S is small (always legal).
    st = sub_tile if S > sub_tile else S
    grid = (pl.cdiv(S, st),)

    kernel = make_maneuvering_kernel(np.asarray(crb), np.asarray(buoyancy),
                                     np.asarray(inv_mass), float(time_delta))

    out_3d = pl.pallas_call(
        kernel,
        out_shape=jax.ShapeDtypeStruct((5, S, L), out_dtype),
        grid_spec=pltpu.PrefetchScalarGridSpec(
            num_scalar_prefetch=0,
            grid=grid,
            in_specs=[
                pl.BlockSpec((4, st, L), lambda i: (0, i, 0)),   # control
                pl.BlockSpec((5, st, L), lambda i: (0, i, 0)),   # state
            ],
            out_specs=pl.BlockSpec((5, st, L), lambda i: (0, i, 0)),
        ),
        compiler_params=pltpu.CompilerParams(
            dimension_semantics=("parallel",)),   # shards across v7x's 2 TCs
    )(control_3d, state_3d)

    out_t = out_3d.reshape(5, n_pad)[:, :N]
    return out_t.T.reshape(B, T, 5)


# ----------------------------------------------------------------------------
# Pure-JAX reference (direct transcription of the PyTorch forward)
# ----------------------------------------------------------------------------
def reference_forward(control, state, crb, buoyancy, inv_mass, time_delta):
    hp = jax.lax.Precision.HIGHEST
    velocity = state[:, :, :4]
    position = jnp.zeros((state.shape[0], state.shape[1], 4),
                         dtype=state.dtype)
    position = position.at[:, :, 2].set(state[:, :, 4])
    tau_crb = jnp.matmul(velocity[:, :, 3][..., None] * velocity, crb,
                         precision=hp)
    tau_hs = jnp.matmul(position, buoyancy, precision=hp)
    tau_total = control - tau_crb - tau_hs
    acceleration = jnp.matmul(tau_total, inv_mass, precision=hp)
    velocity_new = velocity + time_delta * acceleration
    roll_new = position[:, :, 2] + time_delta * velocity[:, :, 2]
    return jnp.concatenate([velocity_new, roll_new[..., None]], axis=2)


if __name__ == "__main__":
    time_delta = 0.1
    B, T = 2, 8

    crb_np, buoy_np, invm_np = build_params()
    crb_j = jnp.asarray(crb_np)
    buoy_j = jnp.asarray(buoy_np)
    invm_j = jnp.asarray(invm_np)

    key = jax.random.PRNGKey(0)
    k_ctrl, k_state = jax.random.split(key)
    control = jax.random.normal(k_ctrl, (B, T, 4), dtype=jnp.float32) * 100.0
    state = jax.random.normal(k_state, (B, T, 5), dtype=jnp.float32)

    out = maneuvering_forward(control, state, crb_np, buoy_np, invm_np,
                              time_delta)
    out = jax.block_until_ready(out)

    ref = reference_forward(control, state, crb_j, buoy_j, invm_j, time_delta)
    np.testing.assert_allclose(np.asarray(out), np.asarray(ref),
                               rtol=1e-5, atol=1e-5)
    print("KERNEL_OK")
</pallas_src>

<mosaic_0001>
module attributes {stable_mosaic.version = 11 : i64} {
  func.func @kernel(%arg0: i32, %arg1: memref<4x1x512xf32, #tpu.memory_space<vmem>>, %arg2: memref<5x1x512xf32, #tpu.memory_space<vmem>>, %arg3: memref<5x1x512xf32, #tpu.memory_space<vmem>>) attributes {dimension_semantics = [#tpu.dimension_semantics<parallel>], iteration_bounds = array<i64: 1>, scalar_prefetch = 0 : i64, scratch_operands = 0 : i64, tpu.core_type = #tpu.core_type<tc>, window_params = [{transform_indices = @transform_0, window_bounds = array<i64: 4, 1, 512>}, {transform_indices = @transform_1, window_bounds = array<i64: 5, 1, 512>}, {transform_indices = @transform_2, window_bounds = array<i64: 5, 1, 512>}]} {
    %c0 = arith.constant 0 : index
    %c0_0 = arith.constant 0 : index
    %c0_1 = arith.constant 0 : index
    %0 = vector.load %arg2[%c0, %c0_0, %c0_1] : memref<5x1x512xf32, #tpu.memory_space<vmem>>, vector<1x1x512xf32>
    %1 = vector.shape_cast %0 : vector<1x1x512xf32> to vector<1x512xf32>
    %c1 = arith.constant 1 : index
    %c0_2 = arith.constant 0 : index
    %c0_3 = arith.constant 0 : index
    %2 = vector.load %arg2[%c1, %c0_2, %c0_3] : memref<5x1x512xf32, #tpu.memory_space<vmem>>, vector<1x1x512xf32>
    %3 = vector.shape_cast %2 : vector<1x1x512xf32> to vector<1x512xf32>
    %c2 = arith.constant 2 : index
    %c0_4 = arith.constant 0 : index
    %c0_5 = arith.constant 0 : index
    %4 = vector.load %arg2[%c2, %c0_4, %c0_5] : memref<5x1x512xf32, #tpu.memory_space<vmem>>, vector<1x1x512xf32>
    %5 = vector.shape_cast %4 : vector<1x1x512xf32> to vector<1x512xf32>
    %c3 = arith.constant 3 : index
    %c0_6 = arith.constant 0 : index
    %c0_7 = arith.constant 0 : index
    %6 = vector.load %arg2[%c3, %c0_6, %c0_7] : memref<5x1x512xf32, #tpu.memory_space<vmem>>, vector<1x1x512xf32>
    %7 = vector.shape_cast %6 : vector<1x1x512xf32> to vector<1x512xf32>
    %c4 = arith.constant 4 : index
    %c0_8 = arith.constant 0 : index
    %c0_9 = arith.constant 0 : index
    %8 = vector.load %arg2[%c4, %c0_8, %c0_9] : memref<5x1x512xf32, #tpu.memory_space<vmem>>, vector<1x1x512xf32>
    %9 = vector.shape_cast %8 : vector<1x1x512xf32> to vector<1x512xf32>
    %10 = arith.mulf %7, %1 : vector<1x512xf32>
    %11 = arith.mulf %7, %3 : vector<1x512xf32>
    %12 = arith.mulf %7, %5 : vector<1x512xf32>
    %13 = arith.mulf %7, %7 : vector<1x512xf32>
    %c0_10 = arith.constant 0 : index
    %c0_11 = arith.constant 0 : index
    %c0_12 = arith.constant 0 : index
    %14 = vector.load %arg1[%c0_10, %c0_11, %c0_12] : memref<4x1x512xf32, #tpu.memory_space<vmem>>, vector<1x1x512xf32>
    %15 = vector.shape_cast %14 : vector<1x1x512xf32> to vector<1x512xf32>
    %cst = arith.constant -1.000000e+03 : f32
    %16 = vector.broadcast %cst : f32 to vector<1x512xf32>
    %17 = arith.mulf %16, %11 : vector<1x512xf32>
    %18 = arith.subf %15, %17 : vector<1x512xf32>
    %cst_13 = arith.constant -5.000000e+01 : f32
    %19 = vector.broadcast %cst_13 : f32 to vector<1x512xf32>
    %20 = arith.mulf %19, %12 : vector<1x512xf32>
    %21 = arith.subf %18, %20 : vector<1x512xf32>
    %cst_14 = arith.constant -1.000000e+02 : f32
    %22 = vector.broadcast %cst_14 : f32 to vector<1x512xf32>
    %23 = arith.mulf %22, %13 : vector<1x512xf32>
    %24 = arith.subf %21, %23 : vector<1x512xf32>
    %c1_15 = arith.constant 1 : index
    %c0_16 = arith.constant 0 : index
    %c0_17 = arith.constant 0 : index
    %25 = vector.load %arg1[%c1_15, %c0_16, %c0_17] : memref<4x1x512xf32, #tpu.memory_space<vmem>>, vector<1x1x512xf32>
    %26 = vector.shape_cast %25 : vector<1x1x512xf32> to vector<1x512xf32>
    %cst_18 = arith.constant 1.000000e+03 : f32
    %27 = vector.broadcast %cst_18 : f32 to vector<1x512xf32>
    %28 = arith.mulf %27, %10 : vector<1x512xf32>
    %29 = arith.subf %26, %28 : vector<1x512xf32>
    %c2_19 = arith.constant 2 : index
    %c0_20 = arith.constant 0 : index
    %c0_21 = arith.constant 0 : index
    %30 = vector.load %arg1[%c2_19, %c0_20, %c0_21] : memref<4x1x512xf32, #tpu.memory_space<vmem>>, vector<1x1x512xf32>
    %31 = vector.shape_cast %30 : vector<1x1x512xf32> to vector<1x512xf32>
    %cst_22 = arith.constant 5.000000e+01 : f32
    %32 = vector.broadcast %cst_22 : f32 to vector<1x512xf32>
    %33 = arith.mulf %32, %10 : vector<1x512xf32>
    %34 = arith.subf %31, %33 : vector<1x512xf32>
    %cst_23 = arith.constant 5027.625 : f32
    %35 = vector.broadcast %cst_23 : f32 to vector<1x512xf32>
    %36 = arith.mulf %35, %9 : vector<1x512xf32>
    %37 = arith.subf %34, %36 : vector<1x512xf32>
    %c3_24 = arith.constant 3 : index
    %c0_25 = arith.constant 0 : index
    %c0_26 = arith.constant 0 : index
    %38 = vector.load %arg1[%c3_24, %c0_25, %c0_26] : memref<4x1x512xf32, #tpu.memory_space<vmem>>, vector<1x1x512xf32>
    %39 = vector.shape_cast %38 : vector<1x1x512xf32> to vector<1x512xf32>
    %cst_27 = arith.constant 1.000000e+02 : f32
    %40 = vector.broadcast %cst_27 : f32 to vector<1x512xf32>
    %41 = arith.mulf %40, %10 : vector<1x512xf32>
    %42 = arith.subf %39, %41 : vector<1x512xf32>
    %cst_28 = arith.constant 0.00105263153 : f32
    %43 = vector.broadcast %cst_28 : f32 to vector<1x512xf32>
    %44 = arith.mulf %43, %24 : vector<1x512xf32>
    %cst_29 = arith.constant 1.000000e-01 : f32
    %45 = vector.broadcast %cst_29 : f32 to vector<1x512xf32>
    %46 = arith.mulf %45, %44 : vector<1x512xf32>
    %47 = arith.addf %1, %46 : vector<1x512xf32>
    %c0_30 = arith.constant 0 : index
    %c0_31 = arith.constant 0 : index
    %c0_32 = arith.constant 0 : index
    %48 = vector.load %arg3[%c0_30, %c0_31, %c0_32] : memref<5x1x512xf32, #tpu.memory_space<vmem>>, vector<1x1x512xf32>
    %49 = vector.shape_cast %48 : vector<1x1x512xf32> to vector<1x512xf32>
    %50 = vector.shape_cast %47 : vector<1x512xf32> to vector<1x1x512xf32>
    tpu.vector_store %arg3[%c0_30, %c0_31, %c0_32], %50 {strides = array<i32>} : memref<5x1x512xf32, #tpu.memory_space<vmem>>, vector<1x1x512xf32>,
    %cst_33 = arith.constant 0.00118655944 : f32
    %51 = vector.broadcast %cst_33 : f32 to vector<1x512xf32>
    %52 = arith.mulf %51, %29 : vector<1x512xf32>
    %cst_34 = arith.constant -6.84339553E-4 : f32
    %53 = vector.broadcast %cst_34 : f32 to vector<1x512xf32>
    %54 = arith.mulf %53, %37 : vector<1x512xf32>
    %55 = arith.addf %52, %54 : vector<1x512xf32>
    %cst_35 = arith.constant -6.75993971E-4 : f32
    %56 = vector.broadcast %cst_35 : f32 to vector<1x512xf32>
    %57 = arith.mulf %56, %42 : vector<1x512xf32>
    %58 = arith.addf %55, %57 : vector<1x512xf32>
    %cst_36 = arith.constant 1.000000e-01 : f32
    %59 = vector.broadcast %cst_36 : f32 to vector<1x512xf32>
    %60 = arith.mulf %59, %58 : vector<1x512xf32>
    %61 = arith.addf %3, %60 : vector<1x512xf32>
    %c1_37 = arith.constant 1 : index
    %c0_38 = arith.constant 0 : index
    %c0_39 = arith.constant 0 : index
    %62 = vector.load %arg3[%c1_37, %c0_38, %c0_39] : memref<5x1x512xf32, #tpu.memory_space<vmem>>, vector<1x1x512xf32>
    %63 = vector.shape_cast %62 : vector<1x1x512xf32> to vector<1x512xf32>
    %64 = vector.shape_cast %61 : vector<1x512xf32> to vector<1x1x512xf32>
    tpu.vector_store %arg3[%c1_37, %c0_38, %c0_39], %64 {strides = array<i32>} : memref<5x1x512xf32, #tpu.memory_space<vmem>>, vector<1x1x512xf32>,
    %cst_40 = arith.constant -6.84339553E-4 : f32
    %65 = vector.broadcast %cst_40 : f32 to vector<1x512xf32>
    %66 = arith.mulf %65, %29 : vector<1x512xf32>
    %cst_41 = arith.constant 0.0128985951 : f32
    %67 = vector.broadcast %cst_41 : f32 to vector<1x512xf32>
    %68 = arith.mulf %67, %37 : vector<1x512xf32>
    %69 = arith.addf %66, %68 : vector<1x512xf32>
    %cst_42 = arith.constant 5.46173425E-4 : f32
    %70 = vector.broadcast %cst_42 : f32 to vector<1x512xf32>
    %71 = arith.mulf %70, %42 : vector<1x512xf32>
    %72 = arith.addf %69, %71 : vector<1x512xf32>
    %cst_43 = arith.constant 1.000000e-01 : f32
    %73 = vector.broadcast %cst_43 : f32 to vector<1x512xf32>
    %74 = arith.mulf %73, %72 : vector<1x512xf32>
    %75 = arith.addf %5, %74 : vector<1x512xf32>
    %c2_44 = arith.constant 2 : index
    %c0_45 = arith.constant 0 : index
    %c0_46 = arith.constant 0 : index
    %76 = vector.load %arg3[%c2_44, %c0_45, %c0_46] : memref<5x1x512xf32, #tpu.memory_space<vmem>>, vector<1x1x512xf32>
    %77 = vector.shape_cast %76 : vector<1x1x512xf32> to vector<1x512xf32>
    %78 = vector.shape_cast %75 : vector<1x512xf32> to vector<1x1x512xf32>
    tpu.vector_store %arg3[%c2_44, %c0_45, %c0_46], %78 {strides = array<i32>} : memref<5x1x512xf32, #tpu.memory_space<vmem>>, vector<1x1x512xf32>,
    %cst_47 = arith.constant -6.75993971E-4 : f32
    %79 = vector.broadcast %cst_47 : f32 to vector<1x512xf32>
    %80 = arith.mulf %79, %29 : vector<1x512xf32>
    %cst_48 = arith.constant 5.46173425E-4 : f32
    %81 = vector.broadcast %cst_48 : f32 to vector<1x512xf32>
    %82 = arith.mulf %81, %37 : vector<1x512xf32>
    %83 = arith.addf %80, %82 : vector<1x512xf32>
    %cst_49 = arith.constant 0.00663707359 : f32
    %84 = vector.broadcast %cst_49 : f32 to vector<1x512xf32>
    %85 = arith.mulf %84, %42 : vector<1x512xf32>
    %86 = arith.addf %83, %85 : vector<1x512xf32>
    %cst_50 = arith.constant 1.000000e-01 : f32
    %87 = vector.broadcast %cst_50 : f32 to vector<1x512xf32>
    %88 = arith.mulf %87, %86 : vector<1x512xf32>
    %89 = arith.addf %7, %88 : vector<1x512xf32>
    %c3_51 = arith.constant 3 : index
    %c0_52 = arith.constant 0 : index
    %c0_53 = arith.constant 0 : index
    %90 = vector.load %arg3[%c3_51, %c0_52, %c0_53] : memref<5x1x512xf32, #tpu.memory_space<vmem>>, vector<1x1x512xf32>
    %91 = vector.shape_cast %90 : vector<1x1x512xf32> to vector<1x512xf32>
    %92 = vector.shape_cast %89 : vector<1x512xf32> to vector<1x1x512xf32>
    tpu.vector_store %arg3[%c3_51, %c0_52, %c0_53], %92 {strides = array<i32>} : memref<5x1x512xf32, #tpu.memory_space<vmem>>, vector<1x1x512xf32>,
    %cst_54 = arith.constant 1.000000e-01 : f32
    %93 = vector.broadcast %cst_54 : f32 to vector<1x512xf32>
    %94 = arith.mulf %93, %5 : vector<1x512xf32>
    %95 = arith.addf %9, %94 : vector<1x512xf32>
    %c4_55 = arith.constant 4 : index
    %c0_56 = arith.constant 0 : index
    %c0_57 = arith.constant 0 : index
    %96 = vector.load %arg3[%c4_55, %c0_56, %c0_57] : memref<5x1x512xf32, #tpu.memory_space<vmem>>, vector<1x1x512xf32>
    %97 = vector.shape_cast %96 : vector<1x1x512xf32> to vector<1x512xf32>
    %98 = vector.shape_cast %95 : vector<1x512xf32> to vector<1x1x512xf32>
    tpu.vector_store %arg3[%c4_55, %c0_56, %c0_57], %98 {strides = array<i32>} : memref<5x1x512xf32, #tpu.memory_space<vmem>>, vector<1x1x512xf32>,
    return
  }
  func.func @transform_0(%arg0: i32) -> (i32, i32, i32) {
    %c0_i32 = arith.constant 0 : i32
    %c0_i32_0 = arith.constant 0 : i32
    %c0_i32_1 = arith.constant 0 : i32
    return %c0_i32, %arg0, %c0_i32_0 : i32, i32, i32
  }
  func.func @transform_1(%arg0: i32) -> (i32, i32, i32) {
    %c0_i32 = arith.constant 0 : i32
    %c0_i32_0 = arith.constant 0 : i32
    %c0_i32_1 = arith.constant 0 : i32
    return %c0_i32, %arg0, %c0_i32_0 : i32, i32, i32
  }
  func.func @transform_2(%arg0: i32) -> (i32, i32, i32) {
    %c0_i32 = arith.constant 0 : i32
    %c0_i32_0 = arith.constant 0 : i32
    %c0_i32_1 = arith.constant 0 : i32
    return %c0_i32, %arg0, %c0_i32_0 : i32, i32, i32
  }
}

</mosaic_0001>

<llo_original>
// kernel: tpu_custom_call.1
$region0: #{tpu_custom_call.1}
  #allocation0 [shape = 'u32[]', space=smem, size = 0x4, offset = 0x4, fixed_abs, tag = 'smem constant byte address 0x4 - core index']
  #allocation1 [shape = 'u32[144,128]{1,0:T(1,128)}', space=vmem, size = 0x12000, scoped, tag = 'internal scratch']
  %s0 = inlined_call_operand.hbm [shape: f32[4,1,512], index: 0, kind: input, shape index: {}]
  %s1 = inlined_call_operand.hbm [shape: f32[5,1,512], index: 1, kind: input, shape index: {}]
  %s2 = inlined_call_operand.hbm [shape: f32[5,1,512], index: 2, kind: output, shape index: {}]
  %s3 = sld [smem:[#allocation0]]
  $region26: #{tpu_custom_call.1} parent=0
    _
  %s5 = ssub.s32 1, %s3
  %s6 = scalar_select 0, %s5, %s3
  $region1: #{tpu_custom_call.1} parent=0
    #allocation2 [shape = 'u8[8192]{0}', space=vmem, size = 0x2000, scoped, tag = 'input window, operand 0, single buffered']
    #allocation3 [shape = 's32[1]{0}', space=sflag, size = 0x4, scoped, tag = 'scoped memory for tpu_custom_call.1']
    #allocation4 [shape = 's32[1]{0}', space=sflag, size = 0x4, scoped, tag = 'scoped memory for tpu_custom_call.1']
    #allocation5 [shape = 'u8[10240]{0}', space=vmem, size = 0x2800, scoped, tag = 'input window, operand 1, single buffered']
    #allocation6 [shape = 's32[1]{0}', space=sflag, size = 0x4, scoped, tag = 'scoped memory for tpu_custom_call.1']
    #allocation7 [shape = 'u8[10240]{0}', space=vmem, size = 0x2800, scoped, tag = 'output window, operand 0, single buffered']
    %7 = vsyncpa [#allocation3], 0
    %8 = vsyncpa [#allocation6], 0
    %9 = vsyncpa [#allocation4], 0
    // Predicated region
    $region2: #{tpu_custom_call.1} parent=1 // pred_check
      _
    $region3: #{tpu_custom_call.1} parent=1 // pred_check_branch
      %11 = sbr.rel (0) target = $region5
    $region4: #{tpu_custom_call.1} parent=1 // pred_region
      %s13 = ssub.s32 256, 256
      %14 = vsyncadd [#allocation3], %s13
      %s15 = sshll.u32 [#allocation2], 4
      %s16 = int_to_ptr.vmem [resolvable:$true] %s15
      %21 = dma.hbm_to_vmem [thread:$0]  %s0, 256, %s16, [#allocation3], 64, 64, 4
    $region5: #{tpu_custom_call.1} parent=1 // pred_fallthru
      _
    // Predicated region
    $region6: #{tpu_custom_call.1} parent=1 // pred_check
      _
    $region7: #{tpu_custom_call.1} parent=1 // pred_check_branch
      %23 = sbr.rel (0) target = $region9
    $region8: #{tpu_custom_call.1} parent=1 // pred_region
      %s25 = ssub.s32 320, 320
      %26 = vsyncadd [#allocation6], %s25
      %s27 = sshll.u32 [#allocation5], 4
      %s28 = int_to_ptr.vmem [resolvable:$true] %s27
      %33 = dma.hbm_to_vmem [thread:$0]  %s1, 320, %s28, [#allocation6], 64, 64, 4
    $region9: #{tpu_custom_call.1} parent=1 // pred_fallthru
      _
    // Predicated region
    $region10: #{tpu_custom_call.1} parent=1 // pred_check
      _
    $region11: #{tpu_custom_call.1} parent=1 // pred_check_branch
      %35 = sbr.rel (0) target = $region13
    $region12: #{tpu_custom_call.1} parent=1 // pred_region
      %36 = dma.done [#allocation3], 256
    $region13: #{tpu_custom_call.1} parent=1 // pred_fallthru
      _
    // Predicated region
    $region14: #{tpu_custom_call.1} parent=1 // pred_check
      _
    $region15: #{tpu_custom_call.1} parent=1 // pred_check_branch
      %38 = sbr.rel (0) target = $region17
    $region16: #{tpu_custom_call.1} parent=1 // pred_region
      %39 = dma.done [#allocation6], 320
    $region17: #{tpu_custom_call.1} parent=1 // pred_fallthru
      _
    %v40 = vld [vmem:[#allocation5] sm:$0xf]
    %s41 = scalar_lea.vmem [#allocation5], 4
    %v42 = vld [vmem:[%s41] sm:$0xf]
    %s43 = scalar_lea.vmem [#allocation5], 8
    %v44 = vld [vmem:[%s43] sm:$0xf]
    %s45 = scalar_lea.vmem [#allocation5], 12
    %v46 = vld [vmem:[%s45] sm:$0xf]
    %s47 = scalar_lea.vmem [#allocation5], 16
    %v48 = vld [vmem:[%s47] sm:$0xf]
    %v49 = vmul.f32 %v46, %v40
    %v50 = vmul.f32 %v46, %v42
    %v51 = vmul.f32 %v46, %v44
    %v52 = vmul.f32 %v46, %v46
    %v53 = vld [vmem:[#allocation2] sm:$0xf]
    %v54 = vmul.f32 %v50, -1000.0
    %v55 = vsub.f32 %v53, %v54
    %v56 = vmul.f32 %v51, -50.0
    %v57 = vsub.f32 %v55, %v56
    %v58 = vmul.f32 %v52, -100.0
    %v59 = vsub.f32 %v57, %v58
    %s60 = scalar_lea.vmem [#allocation2], 4
    %v61 = vld [vmem:[%s60] sm:$0xf]
    %v62 = vmul.f32 %v49, 1000.0
    %v63 = vsub.f32 %v61, %v62
    %s64 = scalar_lea.vmem [#allocation2], 8
    %v65 = vld [vmem:[%s64] sm:$0xf]
    %v66 = vmul.f32 %v49, 50.0
    %v67 = vsub.f32 %v65, %v66
    %v68 = vmul.f32 %v48, 5027.625
    %v69 = vsub.f32 %v67, %v68
    %s70 = scalar_lea.vmem [#allocation2], 12
    %v71 = vld [vmem:[%s70] sm:$0xf]
    %v72 = vmul.f32 %v49, 100.0
    %v73 = vsub.f32 %v71, %v72
    %v74 = vmul.f32 %v59, 0.0010526315
    %v75 = vmul.f32 %v74, 0.1
    %v76 = vadd.f32 %v40, %v75
    %v77 = vlaneseq
    %vm78 = vcmp.ge.s32.totalorder %v77, 0
    %vm79 = vcmp.lt.s32.totalorder %v77, 512
    %vm80 = vmand %vm78, %vm79
    %81 = vst.msk [vmem:[#allocation7] sm:$0xf] %vm80, %v76
    %v82 = vmul.f32 %v63, 0.0011865594
    %v83 = vmul.f32 %v69, -0.00068433955
    %v84 = vadd.f32 %v82, %v83
    %v85 = vmul.f32 %v73, -0.000675994
    %v86 = vadd.f32 %v84, %v85
    %v87 = vmul.f32 %v86, 0.1
    %v88 = vadd.f32 %v42, %v87
    %s89 = scalar_lea.vmem [#allocation7], 4
    %90 = vst.msk [vmem:[%s89] sm:$0xf] %vm80, %v88
    %v91 = vmul.f32 %v63, -0.00068433955
    %v92 = vmul.f32 %v69, 0.012898595
    %v93 = vadd.f32 %v91, %v92
    %v94 = vmul.f32 %v73, 0.0005461734
    %v95 = vadd.f32 %v93, %v94
    %v96 = vmul.f32 %v95, 0.1
    %v97 = vadd.f32 %v44, %v96
    %s98 = scalar_lea.vmem [#allocation7], 8
    %99 = vst.msk [vmem:[%s98] sm:$0xf] %vm80, %v97
    %v100 = vmul.f32 %v63, -0.000675994
    %v101 = vmul.f32 %v69, 0.0005461734
    %v102 = vadd.f32 %v100, %v101
    %v103 = vmul.f32 %v73, 0.0066370736
    %v104 = vadd.f32 %v102, %v103
    %v105 = vmul.f32 %v104, 0.1
    %v106 = vadd.f32 %v46, %v105
    %s107 = scalar_lea.vmem [#allocation7], 12
    %108 = vst.msk [vmem:[%s107] sm:$0xf] %vm80, %v106
    %v109 = vmul.f32 %v44, 0.1
    %v110 = vadd.f32 %v48, %v109
    %s111 = scalar_lea.vmem [#allocation7], 16
    %112 = vst.msk [vmem:[%s111] sm:$0xf] %vm80, %v110
    // Predicated region
    $region18: #{tpu_custom_call.1} parent=1 // pred_check
      _
    $region19: #{tpu_custom_call.1} parent=1 // pred_check_branch
      %114 = sbr.rel (0) target = $region21
    $region20: #{tpu_custom_call.1} parent=1 // pred_region
      %s116 = ssub.s32 320, 320
      %117 = vsyncadd [#allocation4], %s116
      %s118 = sshll.u32 [#allocation7], 4
      %s119 = int_to_ptr.vmem [resolvable:$true] %s118
      %124 = dma.vmem_to_hbm [thread:$0]  %s119, 320, %s2, [#allocation4], 64, 64, 4
    $region21: #{tpu_custom_call.1} parent=1 // pred_fallthru
      _
    // Predicated region
    $region22: #{tpu_custom_call.1} parent=1 // pred_check
      _
    $region23: #{tpu_custom_call.1} parent=1 // pred_check_branch
      %126 = sbr.rel (0) target = $region25
    $region24: #{tpu_custom_call.1} parent=1 // pred_region
      %127 = dma.done [#allocation4], 320
    $region25: #{tpu_custom_call.1} parent=1 // pred_fallthru
      _
    %128 = vsyncpa [#allocation3], 1
    %129 = vsyncpa [#allocation6], 1
    %130 = vsyncpa [#allocation4], 1

</llo_original>
